<compile_context>
chip_gen: v7x
topology: tpu7x:2x2x1
jax: 0.10.0
libtpu: 0.0.40
codegen_flags: <defaults>
</compile_context>

<pallas_src>
from functools import partial

import jax
import jax.numpy as jnp
from jax.experimental import pallas as pl
from jax.experimental.pallas import tpu as pltpu

K = 5      # conv kernel size
PAD = 2    # SAME padding for stride 1


def _round_up(a, b):
    return (a + b - 1) // b * b


def _pick_tile_rows(h_eff, max_rows):
    """Largest multiple of 8 that divides h_eff and is <= max_rows (h_eff is a mult of 8)."""
    th = 8
    for cand in range(8, min(h_eff, max_rows) + 1, 8):
        if h_eff % cand == 0:
            th = cand
    return th


def single_conv_kernel(x_cur, x_nxt, w_ref, b_ref, o_ref, slab):
    # x_cur : (1, TH, LANES)    current TH-row block of the lane-packed padded input (bf16)
    # x_nxt : (1, TH, LANES)    next TH-row block (only its first K-1 rows are used: halo)
    # w_ref : (K, LANES, Nout)  banded, BN-folded conv weights (bf16), VMEM-resident
    # b_ref : (1, Nout)         folded bias (conv bias + BN shift), broadcast over W (f32)
    # o_ref : (1, TH, Nout)     output tile, Nout = W*Cout (lane-dense, f32)
    # slab  : (TH+K-1, LANES)   VMEM scratch holding the halo'd row slab
    tile_rows = x_cur.shape[1]
    kk = w_ref.shape[0]
    halo = kk - 1
    nout = o_ref.shape[2]

    # Assemble the halo'd slab with two wide (full-lane) copies.
    slab[:tile_rows, :] = x_cur[0]
    slab[tile_rows:tile_rows + halo, :] = x_nxt[0, :halo, :]

    # 5 row-shifted MXU contractions against the banded weight bank (f32 accumulation).
    acc = jnp.dot(slab[0:tile_rows, :], w_ref[0], preferred_element_type=jnp.float32)
    for kh in range(1, kk):
        acc = acc + jnp.dot(slab[kh:kh + tile_rows, :], w_ref[kh],
                            preferred_element_type=jnp.float32)

    # Folded-BN bias + ReLU, lane-dense store.
    y = jnp.maximum(acc + b_ref[...], 0.0)
    o_ref[...] = y.reshape(1, tile_rows, nout).astype(o_ref.dtype)


@partial(jax.jit, static_argnames=("eps", "max_tile_rows"))
def single_conv(x_nchw, w_oihw, conv_b, gamma, beta, run_mean, run_var,
                eps=1e-5, max_tile_rows=128):
    N, Cin, H, W = x_nchw.shape
    Cout = w_oihw.shape[0]

    Wp = W + 2 * PAD
    WpC = Wp * Cin                           # lane-packed row width
    LANES = _round_up(WpC, 128)              # pad to full vreg lanes
    Nout = W * Cout                          # lane-dense output width

    H_eff = _round_up(H, 8)                  # extra zero rows, sliced off afterwards
    TH = _pick_tile_rows(H_eff, max_tile_rows)
    n_h = H_eff // TH
    THp = TH + (K - 1)
    R = (n_h + 1) * TH                       # padded rows so block h+1 always exists

    # ---- fold eval-mode BatchNorm into the conv -------------------------------------
    scale = gamma / jnp.sqrt(run_var + eps)                     # (Cout,)
    bias = ((conv_b - run_mean) * scale + beta).astype(jnp.float32)
    wf = (w_oihw * scale[:, None, None, None]).astype(jnp.float32)   # (Cout,Cin,K,K)

    # ---- banded weight bank: bank[kh, cp*Cin+cin, c*Cout+cout] = wf[cout,cin,kh,cp-c] -
    wf_t = jnp.transpose(wf, (2, 3, 1, 0))                      # (Kh, Kw, Cin, Cout)
    cp = jnp.arange(Wp)[:, None]                                # padded column index
    cc = jnp.arange(W)[None, :]                                 # output column index
    kw = cp - cc                                                # (Wp, W)
    valid = ((kw >= 0) & (kw < K)).astype(wf_t.dtype)
    kw_c = jnp.clip(kw, 0, K - 1)
    bank = wf_t[:, kw_c, :, :] * valid[None, :, :, None, None]  # (K, Wp, W, Cin, Cout)
    bank = jnp.transpose(bank, (0, 1, 3, 2, 4)).reshape(K, WpC, Nout)
    bank = jnp.pad(bank, ((0, 0), (0, LANES - WpC), (0, 0))).astype(jnp.bfloat16)
    bias_row = jnp.tile(bias, (W,)).reshape(1, Nout)            # (1, W*Cout) f32

    # ---- input: NCHW -> lane-packed, zero-padded (N, R, LANES) bf16 ------------------
    x = jnp.transpose(x_nchw, (0, 2, 3, 1)).astype(jnp.bfloat16)          # NHWC
    x = jnp.pad(x, ((0, 0), (PAD, R - H - PAD), (PAD, PAD), (0, 0)))      # (N, R, Wp, Cin)
    x = x.reshape(N, R, WpC)
    if LANES > WpC:
        x = jnp.pad(x, ((0, 0), (0, 0), (0, LANES - WpC)))                # (N, R, LANES)

    # ---- VMEM budget derived from the tile math (clamped for v7x's 64 MiB) -----------
    est = (2 * 2 * TH * LANES * 2                       # two input specs, double-buffered
           + 2 * K * LANES * Nout * 2                   # weight bank
           + 2 * 8 * _round_up(Nout, 128) * 4           # bias row
           + 2 * TH * _round_up(Nout, 128) * 4          # output tile, double-buffered
           + _round_up(THp, 8) * LANES * 2)             # slab scratch
    vmem_limit = int(min(64 * 1024 * 1024, max(32 * 1024 * 1024, 2 * est)))

    cost = pl.CostEstimate(
        flops=2 * N * n_h * K * TH * LANES * Nout,
        transcendentals=0,
        bytes_accessed=2 * N * n_h * TH * LANES * 2 + K * LANES * Nout * 2
                       + N * H_eff * Nout * 4,
    )

    out = pl.pallas_call(
        single_conv_kernel,
        out_shape=jax.ShapeDtypeStruct((N, H_eff, Nout), jnp.float32),
        grid_spec=pltpu.PrefetchScalarGridSpec(
            num_scalar_prefetch=0,
            grid=(N, n_h),
            in_specs=[
                pl.BlockSpec((1, TH, LANES), lambda n, h: (n, h, 0)),       # current rows
                pl.BlockSpec((1, TH, LANES), lambda n, h: (n, h + 1, 0)),   # next rows (halo)
                pl.BlockSpec((K, LANES, Nout), lambda n, h: (0, 0, 0)),     # weight bank
                pl.BlockSpec((1, Nout), lambda n, h: (0, 0)),               # bias row
            ],
            out_specs=pl.BlockSpec((1, TH, Nout), lambda n, h: (n, h, 0)),
            scratch_shapes=[pltpu.VMEM((THp, LANES), jnp.bfloat16)],
        ),
        compiler_params=pltpu.CompilerParams(
            dimension_semantics=("parallel", "parallel"),
            vmem_limit_bytes=vmem_limit,
        ),
        cost_estimate=cost,
    )(x, x, bank, bias_row)

    out = out[:, :H, :].reshape(N, H, W, Cout)
    return jnp.transpose(out, (0, 3, 1, 2))                     # back to NCHW


def _reference(x_nchw, w_oihw, conv_b, gamma, beta, run_mean, run_var, eps=1e-5):
    z = jax.lax.conv_general_dilated(
        x_nchw, w_oihw, window_strides=(1, 1), padding=[(PAD, PAD), (PAD, PAD)],
        dimension_numbers=('NCHW', 'OIHW', 'NCHW'))
    z = z + conv_b[None, :, None, None]
    z = (z - run_mean[None, :, None, None]) / jnp.sqrt(run_var[None, :, None, None] + eps)
    z = z * gamma[None, :, None, None] + beta[None, :, None, None]
    return jnp.maximum(z, 0.0)


if __name__ == "__main__":
    key = jax.random.PRNGKey(0)
    k_x, k_w, k_b, k_g, k_be, k_m, k_v = jax.random.split(key, 7)

    N, Cin, Cout, H, W = 2, 4, 8, 16, 16
    x = jax.random.normal(k_x, (N, Cin, H, W), dtype=jnp.float32)

    # Conv2d / BatchNorm2d-shaped parameters (non-trivial BN stats to exercise folding).
    w_oihw = jax.random.normal(k_w, (Cout, Cin, K, K), dtype=jnp.float32) * 0.1
    conv_b = jax.random.normal(k_b, (Cout,), dtype=jnp.float32) * 0.1
    gamma = 1.0 + 0.1 * jax.random.normal(k_g, (Cout,), dtype=jnp.float32)
    beta = 0.1 * jax.random.normal(k_be, (Cout,), dtype=jnp.float32)
    run_mean = 0.1 * jax.random.normal(k_m, (Cout,), dtype=jnp.float32)
    run_var = jax.random.uniform(k_v, (Cout,), jnp.float32, 0.5, 1.5)

    out = jax.block_until_ready(
        single_conv(x, w_oihw, conv_b, gamma, beta, run_mean, run_var))
    ref = _reference(x, w_oihw, conv_b, gamma, beta, run_mean, run_var)

    assert out.shape == (N, Cout, H, W)
    # bf16 matmul operands with f32 accumulation -> slightly loosened tolerance.
    assert jnp.allclose(out, ref, atol=3e-2, rtol=3e-2), "mismatch vs reference conv"

    print("KERNEL_OK")
</pallas_src>

<mosaic_0001>
module attributes {stable_mosaic.version = 11 : i64} {
  func.func @single_conv_kernel(%arg0: i32, %arg1: i32, %arg2: memref<1x16x128xbf16, #tpu.memory_space<vmem>>, %arg3: memref<1x16x128xbf16, #tpu.memory_space<vmem>>, %arg4: memref<5x128x128xbf16, #tpu.memory_space<vmem>>, %arg5: memref<1x128xf32, #tpu.memory_space<vmem>>, %arg6: memref<1x16x128xf32, #tpu.memory_space<vmem>>, %arg7: memref<20x128xbf16, #tpu.memory_space<vmem>>) attributes {dimension_semantics = [#tpu.dimension_semantics<parallel>, #tpu.dimension_semantics<parallel>], iteration_bounds = array<i64: 2, 1>, scalar_prefetch = 0 : i64, scratch_operands = 1 : i64, tpu.core_type = #tpu.core_type<tc>, window_params = [{transform_indices = @transform_0, window_bounds = array<i64: 1, 16, 128>}, {transform_indices = @transform_1, window_bounds = array<i64: 1, 16, 128>}, {pipeline_mode = #tpu.pipeline_mode<synchronous>, transform_indices = @transform_2, window_bounds = array<i64: 5, 128, 128>}, {pipeline_mode = #tpu.pipeline_mode<synchronous>, transform_indices = @transform_3, window_bounds = array<i64: 1, 128>}, {transform_indices = @transform_4, window_bounds = array<i64: 1, 16, 128>}]} {
    %c0 = arith.constant 0 : index
    %c0_0 = arith.constant 0 : index
    %c0_1 = arith.constant 0 : index
    %0 = vector.load %arg2[%c0, %c0_0, %c0_1] : memref<1x16x128xbf16, #tpu.memory_space<vmem>>, vector<1x16x128xbf16>
    %1 = vector.shape_cast %0 : vector<1x16x128xbf16> to vector<16x128xbf16>
    %c0_2 = arith.constant 0 : index
    %c0_3 = arith.constant 0 : index
    %2 = vector.load %arg7[%c0_2, %c0_3] : memref<20x128xbf16, #tpu.memory_space<vmem>>, vector<16x128xbf16>
    tpu.vector_store %arg7[%c0_2, %c0_3], %1 {strides = array<i32>} : memref<20x128xbf16, #tpu.memory_space<vmem>>, vector<16x128xbf16>,
    %c0_4 = arith.constant 0 : index
    %c0_5 = arith.constant 0 : index
    %c0_6 = arith.constant 0 : index
    %3 = vector.load %arg3[%c0_4, %c0_5, %c0_6] : memref<1x16x128xbf16, #tpu.memory_space<vmem>>, vector<1x4x128xbf16>
    %4 = vector.shape_cast %3 : vector<1x4x128xbf16> to vector<4x128xbf16>
    %c16 = arith.constant 16 : index
    %c0_7 = arith.constant 0 : index
    %5 = vector.load %arg7[%c16, %c0_7] : memref<20x128xbf16, #tpu.memory_space<vmem>>, vector<4x128xbf16>
    tpu.vector_store %arg7[%c16, %c0_7], %4 {strides = array<i32>} : memref<20x128xbf16, #tpu.memory_space<vmem>>, vector<4x128xbf16>,
    %c0_8 = arith.constant 0 : index
    %c0_9 = arith.constant 0 : index
    %6 = vector.load %arg7[%c0_8, %c0_9] : memref<20x128xbf16, #tpu.memory_space<vmem>>, vector<16x128xbf16>
    %c0_10 = arith.constant 0 : index
    %c0_11 = arith.constant 0 : index
    %c0_12 = arith.constant 0 : index
    %7 = vector.load %arg4[%c0_10, %c0_11, %c0_12] : memref<5x128x128xbf16, #tpu.memory_space<vmem>>, vector<1x128x128xbf16>
    %8 = vector.shape_cast %7 : vector<1x128x128xbf16> to vector<128x128xbf16>
    %cst = arith.constant dense<0.000000e+00> : vector<16x128xf32>
    %9 = tpu.matmul %6, %8, %cst {dimension_numbers = #tpu.dot_dimension_numbers<[1], [0], [0], [1], [0, 0, 1, 1], [], []>} : vector<16x128xbf16>, vector<128x128xbf16>, vector<16x128xf32> -> vector<16x128xf32>
    %c1 = arith.constant 1 : index
    %c0_13 = arith.constant 0 : index
    %10 = vector.load %arg7[%c1, %c0_13] : memref<20x128xbf16, #tpu.memory_space<vmem>>, vector<16x128xbf16>
    %c1_14 = arith.constant 1 : index
    %c0_15 = arith.constant 0 : index
    %c0_16 = arith.constant 0 : index
    %11 = vector.load %arg4[%c1_14, %c0_15, %c0_16] : memref<5x128x128xbf16, #tpu.memory_space<vmem>>, vector<1x128x128xbf16>
    %12 = vector.shape_cast %11 : vector<1x128x128xbf16> to vector<128x128xbf16>
    %cst_17 = arith.constant dense<0.000000e+00> : vector<16x128xf32>
    %13 = tpu.matmul %10, %12, %cst_17 {dimension_numbers = #tpu.dot_dimension_numbers<[1], [0], [0], [1], [0, 0, 1, 1], [], []>} : vector<16x128xbf16>, vector<128x128xbf16>, vector<16x128xf32> -> vector<16x128xf32>
    %14 = arith.addf %9, %13 : vector<16x128xf32>
    %c2 = arith.constant 2 : index
    %c0_18 = arith.constant 0 : index
    %15 = vector.load %arg7[%c2, %c0_18] : memref<20x128xbf16, #tpu.memory_space<vmem>>, vector<16x128xbf16>
    %c2_19 = arith.constant 2 : index
    %c0_20 = arith.constant 0 : index
    %c0_21 = arith.constant 0 : index
    %16 = vector.load %arg4[%c2_19, %c0_20, %c0_21] : memref<5x128x128xbf16, #tpu.memory_space<vmem>>, vector<1x128x128xbf16>
    %17 = vector.shape_cast %16 : vector<1x128x128xbf16> to vector<128x128xbf16>
    %cst_22 = arith.constant dense<0.000000e+00> : vector<16x128xf32>
    %18 = tpu.matmul %15, %17, %cst_22 {dimension_numbers = #tpu.dot_dimension_numbers<[1], [0], [0], [1], [0, 0, 1, 1], [], []>} : vector<16x128xbf16>, vector<128x128xbf16>, vector<16x128xf32> -> vector<16x128xf32>
    %19 = arith.addf %14, %18 : vector<16x128xf32>
    %c3 = arith.constant 3 : index
    %c0_23 = arith.constant 0 : index
    %20 = vector.load %arg7[%c3, %c0_23] : memref<20x128xbf16, #tpu.memory_space<vmem>>, vector<16x128xbf16>
    %c3_24 = arith.constant 3 : index
    %c0_25 = arith.constant 0 : index
    %c0_26 = arith.constant 0 : index
    %21 = vector.load %arg4[%c3_24, %c0_25, %c0_26] : memref<5x128x128xbf16, #tpu.memory_space<vmem>>, vector<1x128x128xbf16>
    %22 = vector.shape_cast %21 : vector<1x128x128xbf16> to vector<128x128xbf16>
    %cst_27 = arith.constant dense<0.000000e+00> : vector<16x128xf32>
    %23 = tpu.matmul %20, %22, %cst_27 {dimension_numbers = #tpu.dot_dimension_numbers<[1], [0], [0], [1], [0, 0, 1, 1], [], []>} : vector<16x128xbf16>, vector<128x128xbf16>, vector<16x128xf32> -> vector<16x128xf32>
    %24 = arith.addf %19, %23 : vector<16x128xf32>
    %c4 = arith.constant 4 : index
    %c0_28 = arith.constant 0 : index
    %25 = vector.load %arg7[%c4, %c0_28] : memref<20x128xbf16, #tpu.memory_space<vmem>>, vector<16x128xbf16>
    %c4_29 = arith.constant 4 : index
    %c0_30 = arith.constant 0 : index
    %c0_31 = arith.constant 0 : index
    %26 = vector.load %arg4[%c4_29, %c0_30, %c0_31] : memref<5x128x128xbf16, #tpu.memory_space<vmem>>, vector<1x128x128xbf16>
    %27 = vector.shape_cast %26 : vector<1x128x128xbf16> to vector<128x128xbf16>
    %cst_32 = arith.constant dense<0.000000e+00> : vector<16x128xf32>
    %28 = tpu.matmul %25, %27, %cst_32 {dimension_numbers = #tpu.dot_dimension_numbers<[1], [0], [0], [1], [0, 0, 1, 1], [], []>} : vector<16x128xbf16>, vector<128x128xbf16>, vector<16x128xf32> -> vector<16x128xf32>
    %29 = arith.addf %24, %28 : vector<16x128xf32>
    %c0_33 = arith.constant 0 : index
    %c0_34 = arith.constant 0 : index
    %30 = vector.load %arg5[%c0_33, %c0_34] : memref<1x128xf32, #tpu.memory_space<vmem>>, vector<1x128xf32>
    %31 = vector.broadcast %30 : vector<1x128xf32> to vector<16x128xf32>
    %32 = arith.addf %29, %31 : vector<16x128xf32>
    %cst_35 = arith.constant 0.000000e+00 : f32
    %33 = vector.broadcast %cst_35 : f32 to vector<16x128xf32>
    %34 = arith.maximumf %32, %33 : vector<16x128xf32>
    %35 = vector.shape_cast %34 : vector<16x128xf32> to vector<1x16x128xf32>
    %c0_36 = arith.constant 0 : index
    %c0_37 = arith.constant 0 : index
    %c0_38 = arith.constant 0 : index
    %36 = vector.load %arg6[%c0_36, %c0_37, %c0_38] : memref<1x16x128xf32, #tpu.memory_space<vmem>>, vector<1x16x128xf32>
    tpu.vector_store %arg6[%c0_36, %c0_37, %c0_38], %35 {strides = array<i32>} : memref<1x16x128xf32, #tpu.memory_space<vmem>>, vector<1x16x128xf32>,
    return
  }
  func.func @transform_0(%arg0: i32, %arg1: i32) -> (i32, i32, i32) {
    %c0_i32 = arith.constant 0 : i32
    %c0_i32_0 = arith.constant 0 : i32
    return %arg0, %arg1, %c0_i32 : i32, i32, i32
  }
  func.func @transform_1(%arg0: i32, %arg1: i32) -> (i32, i32, i32) {
    %c1_i32 = arith.constant 1 : i32
    %0 = arith.addi %arg1, %c1_i32 : i32
    %c0_i32 = arith.constant 0 : i32
    %c0_i32_0 = arith.constant 0 : i32
    return %arg0, %0, %c0_i32 : i32, i32, i32
  }
  func.func @transform_2(%arg0: i32, %arg1: i32) -> (i32, i32, i32) {
    %c0_i32 = arith.constant 0 : i32
    %c0_i32_0 = arith.constant 0 : i32
    %c0_i32_1 = arith.constant 0 : i32
    %c0_i32_2 = arith.constant 0 : i32
    return %c0_i32, %c0_i32_0, %c0_i32_1 : i32, i32, i32
  }
  func.func @transform_3(%arg0: i32, %arg1: i32) -> (i32, i32) {
    %c0_i32 = arith.constant 0 : i32
    %c0_i32_0 = arith.constant 0 : i32
    %c0_i32_1 = arith.constant 0 : i32
    return %c0_i32, %c0_i32_0 : i32, i32
  }
  func.func @transform_4(%arg0: i32, %arg1: i32) -> (i32, i32, i32) {
    %c0_i32 = arith.constant 0 : i32
    %c0_i32_0 = arith.constant 0 : i32
    return %arg0, %arg1, %c0_i32 : i32, i32, i32
  }
}

</mosaic_0001>

<llo_original>
// kernel: tile.8
$region0: #{tile.8}
  #allocation0 [shape = 's32[1]{0}', space=sflag, size = 0x4, scoped, tag = 'scoped memory for tile.8']
  %s0 = inlined_call_operand.vmem [shape: f32[8], index: 0, kind: input, shape index: {}]
  %s1 = inlined_call_operand.vmem [shape: f32[16,8], index: 1, kind: output, shape index: {}]
  // Predicated region
  $region2: #{tile.8} parent=0 // pred_check
    _
  $region3: #{tile.8} parent=0 // pred_check_branch
    %3 = sbr.rel (0) target = $region5
  $region4: #{tile.8} parent=0 // pred_region
    _
  $region5: #{tile.8} parent=0 // pred_fallthru
    _
  %v4 = vld [vmem:[%s0] ss:$0 sm:$0xff]
  %5 = vst [vmem:[%s1] sm:$0xff] %v4
  %s6 = scalar_lea.vmem %s1, 8
  %7 = vst [vmem:[%s6] sm:$0xff] %v4

// kernel: tile.9
$region0: #{tile.9}
  %s0 = inlined_call_operand.vmem [shape: f32[16,8], index: 0, kind: input, shape index: {}]
  %s1 = inlined_call_operand.vmem [shape: f32[1,128], index: 1, kind: output, shape index: {}]
  $region1: #{tile.9} parent=0
    #allocation0 [shape = 'u8[4096]{0}', space=vmem, size = 0x1000, scoped, tag = 'scoped mem for output reshape']
    %v2 = vld [vmem:[%s0] sm:$0x1]
    %vm3 = vcmask 64512
    %4 = vst.msk [vmem:[#allocation0] sm:$0x1] %vm3, %v2
    %s5 = scalar_lea.vmem %s0, 15
    %v6 = vld [vmem:[%s5] sm:$0x1]
    %7 = vrot.lane.b32.xlu0 %v6, 120
    %v8 = vpop.permute.xlu0 %7
    %vm9 = vcmask 1048512
    %10 = vst.msk [vmem:[#allocation0] sm:$0x1] %vm9, %v8
    %s11 = scalar_lea.vmem %s0, 14
    %v12 = vld [vmem:[%s11] sm:$0x1]
    %13 = vrot.lane.b32.xlu0 %v12, 112
    %v14 = vpop.permute.xlu0 %13
    %vm15 = vcmask 982912
    %16 = vst.msk [vmem:[#allocation0] sm:$0x1] %vm15, %v14
    %s17 = scalar_lea.vmem %s0, 13
    %v18 = vld [vmem:[%s17] sm:$0x1]
    %19 = vrot.lane.b32.xlu0 %v18, 104
    %v20 = vpop.permute.xlu0 %19
    %vm21 = vcmask 917312
    %22 = vst.msk [vmem:[#allocation0] sm:$0x1] %vm21, %v20
    %s23 = scalar_lea.vmem %s0, 12
    %v24 = vld [vmem:[%s23] sm:$0x1]
    %25 = vrot.lane.b32.xlu0 %v24, 96
    %v26 = vpop.permute.xlu0 %25
    %vm27 = vcmask 851712
    %28 = vst.msk [vmem:[#allocation0] sm:$0x1] %vm27, %v26
    %s29 = scalar_lea.vmem %s0, 11
    %v30 = vld [vmem:[%s29] sm:$0x1]
    %31 = vrot.lane.b32.xlu0 %v30, 88
    %v32 = vpop.permute.xlu0 %31
    %vm33 = vcmask 786112
    %34 = vst.msk [vmem:[#allocation0] sm:$0x1] %vm33, %v32
    %s35 = scalar_lea.vmem %s0, 10
    %v36 = vld [vmem:[%s35] sm:$0x1]
    %37 = vrot.lane.b32.xlu0 %v36, 80
    %v38 = vpop.permute.xlu0 %37
    %vm39 = vcmask 720512
    %40 = vst.msk [vmem:[#allocation0] sm:$0x1] %vm39, %v38
    %s41 = scalar_lea.vmem %s0, 9
    %v42 = vld [vmem:[%s41] sm:$0x1]
    %43 = vrot.lane.b32.xlu0 %v42, 72
    %v44 = vpop.permute.xlu0 %43
    %vm45 = vcmask 654912
    %46 = vst.msk [vmem:[#allocation0] sm:$0x1] %vm45, %v44
    %s47 = scalar_lea.vmem %s0, 8
    %v48 = vld [vmem:[%s47] sm:$0x1]
    %49 = vrot.lane.b32.xlu0 %v48, 64
    %v50 = vpop.permute.xlu0 %49
    %vm51 = vcmask 589312
    %52 = vst.msk [vmem:[#allocation0] sm:$0x1] %vm51, %v50
    %s53 = scalar_lea.vmem %s0, 7
    %v54 = vld [vmem:[%s53] sm:$0x1]
    %55 = vrot.lane.b32.xlu0 %v54, 56
    %v56 = vpop.permute.xlu0 %55
    %vm57 = vcmask 523712
    %58 = vst.msk [vmem:[#allocation0] sm:$0x1] %vm57, %v56
    %s59 = scalar_lea.vmem %s0, 6
    %v60 = vld [vmem:[%s59] sm:$0x1]
    %61 = vrot.lane.b32.xlu0 %v60, 48
    %v62 = vpop.permute.xlu0 %61
    %vm63 = vcmask 458112
    %64 = vst.msk [vmem:[#allocation0] sm:$0x1] %vm63, %v62
    %s65 = scalar_lea.vmem %s0, 5
    %v66 = vld [vmem:[%s65] sm:$0x1]
    %67 = vrot.lane.b32.xlu0 %v66, 40
    %v68 = vpop.permute.xlu0 %67
    %vm69 = vcmask 392512
    %70 = vst.msk [vmem:[#allocation0] sm:$0x1] %vm69, %v68
    %s71 = scalar_lea.vmem %s0, 4
    %v72 = vld [vmem:[%s71] sm:$0x1]
    %73 = vrot.lane.b32.xlu0 %v72, 32
    %v74 = vpop.permute.xlu0 %73
    %vm75 = vcmask 326912
    %76 = vst.msk [vmem:[#allocation0] sm:$0x1] %vm75, %v74
    %s77 = scalar_lea.vmem %s0, 3
    %v78 = vld [vmem:[%s77] sm:$0x1]
    %79 = vrot.lane.b32.xlu0 %v78, 24
    %v80 = vpop.permute.xlu0 %79
    %vm81 = vcmask 261312
    %82 = vst.msk [vmem:[#allocation0] sm:$0x1] %vm81, %v80
    %s83 = scalar_lea.vmem %s0, 2
    %v84 = vld [vmem:[%s83] sm:$0x1]
    %85 = vrot.lane.b32.xlu0 %v84, 16
    %v86 = vpop.permute.xlu0 %85
    %vm87 = vcmask 195712
    %88 = vst.msk [vmem:[#allocation0] sm:$0x1] %vm87, %v86
    %s89 = scalar_lea.vmem %s0, 1
    %v90 = vld [vmem:[%s89] sm:$0x1]
    %91 = vrot.lane.b32.xlu0 %v90, 8
    %v92 = vpop.permute.xlu0 %91
    %vm93 = vcmask 130112
    %94 = vst.msk [vmem:[#allocation0] sm:$0x1] %vm93, %v92
    %s96 = sshllo.u32 0, 1
    %v98 = vld [vmem:[#allocation0] sm:%s96]
    %s99 = sshllo.u32 0, 1
    %100 = vst [vmem:[%s1] sm:%s99] %v98

// kernel: single_conv.1
$region0: #{single_conv.1}
  #allocation0 [shape = 'u32[]', space=smem, size = 0x4, offset = 0x4, fixed_abs, tag = 'smem constant byte address 0x4 - core index']
  #allocation1 [shape = 'u32[144,128]{1,0:T(1,128)}', space=vmem, size = 0x12000, scoped, tag = 'internal scratch']
  #allocation2 [shape = 'bf16[20,128]{1,0:T(8,128)(2,1)}', space=vmem, size = 0x1800, scoped, tag = 'scratch operand']
  %s0 = inlined_call_operand.vmem [shape: bf16[2,32,128], index: 0, kind: input, shape index: {}, may-alias: {0,1}]
  %s1 = inlined_call_operand.vmem [shape: bf16[2,32,128], index: 1, kind: input, shape index: {}, may-alias: {0,1}]
  %s2 = inlined_call_operand.vmem [shape: bf16[5,128,128], index: 2, kind: input, shape index: {}]
  %s3 = inlined_call_operand.vmem [shape: f32[1,128], index: 3, kind: input, shape index: {}]
  %s4 = inlined_call_operand.vmem [shape: f32[2,16,128], index: 4, kind: output, shape index: {}]
  %s5 = sld [smem:[#allocation0]]
  $region49: #{single_conv.1} parent=0
    _
  %s7 = ssub.s32 1, %s5
  %s8 = scalar_select 0, %s7, %s5
  loop: start=0, step=1, limit=4
  $region2: #{single_conv.1} parent=0 // loop_pre_header
    _
  $region3: #{single_conv.1} parent=0 // loop_header
    %s10 = sphi 0, %s14
    %p11 = scmp.ge.s32.totalorder %s10, 4
    %s17 = sphi 0, %s29
    %s18 = sphi 0, %s25
    %s19 = sphi 0, %s17
    %s20 = sphi 0, %s18
    %s21 = sphi 0, %s19
    %s22 = sphi 0, %s20
    %s34 = sphi 0, %s36
    %s37 = sphi 0, %s34
    %s38 = sphi 0, %s37
    %s54 = sphi 0, %s38
    %s64 = sphi 0, %s66
    %s67 = sphi 0, %s64
    %s68 = sphi 0, %s67
    %s84 = sphi 0, %s68
    %s88 = sphi 0, %s88
    %s90 = sphi 0, %s88
    %s91 = sphi 0, %s90
    %s105 = sphi 0, %s91
    %s109 = sphi 0, %s109
    %s111 = sphi 0, %s109
    %s112 = sphi 0, %s111
    %s126 = sphi 0, %s112
    %s134 = sphi 0, %s136
    %s137 = sphi 0, %s134
    %s138 = sphi 0, %s137
    %s154 = sphi 0, %s138
  $region4: #{single_conv.1} parent=0 // loop_header_branch
    %13 = sbr.rel (%p11) target = $region8
  $region5: #{single_conv.1} parent=0 // loop_body
    %s15 = ssub.s32 %s10, 1
    %s16 = ssub.s32 %s10, 2
    %s23 = sadd.s32 1, %s18
    %p24 = scmp.ge.s32.totalorder %s23, 1
    %s25 = scalar_select %p24, 0, %s23
    %s26 = sadd.s32 1, %s17
    %s27 = scalar_select %p24, %s26, %s17
    %p28 = scmp.ge.s32.totalorder %s27, 2
    %s29 = scalar_select %p28, 0, %s27
    %s30 = ssub.s32 %s17, %s29
    %s31 = ssub.s32 %s18, %s25
    %s32 = sor.u32 %s30, %s31
    %p33 = scmp.eq.s32.totalorder %s32, 0
    %s35 = sadd.s32 %s34, 1
    %s36 = scalar_select %p33, %s34, %s35
    %p39 = pneg %p33
    %p40 = scmp.eq.s32.totalorder %s10, 1
    %p41 = por %p39, %p40
    %p42 = scmp.ne.s32.totalorder %s34, %s37
    %p43 = scmp.eq.s32.totalorder %s10, 0
    %p44 = por %p42, %p43
    %p45 = scmp.ne.s32.totalorder %s34, %s37
    %p46 = scmp.eq.s32.totalorder %s15, 1
    %p47 = por %p45, %p46
    %p48 = scmp.ne.s32.totalorder %s37, %s38
    %p49 = scmp.eq.s32.totalorder %s15, 0
    %p50 = por %p48, %p49
    %p51 = scmp.ne.s32.totalorder %s37, %s38
    %p52 = scmp.eq.s32.totalorder %s16, 1
    %p53 = por %p51, %p52
    %p55 = scmp.ne.s32.totalorder %s38, %s54
    %p56 = scmp.eq.s32.totalorder %s16, 0
    %p57 = por %p55, %p56
    %s58 = sadd.s32 %s18, 1
    %s59 = sadd.s32 %s25, 1
    %s60 = ssub.s32 %s17, %s29
    %s61 = ssub.s32 %s58, %s59
    %s62 = sor.u32 %s60, %s61
    %p63 = scmp.eq.s32.totalorder %s62, 0
    %s65 = sadd.s32 %s64, 1
    %s66 = scalar_select %p63, %s64, %s65
    %p69 = pneg %p63
    %p70 = scmp.eq.s32.totalorder %s10, 1
    %p71 = por %p69, %p70
    %p72 = scmp.ne.s32.totalorder %s64, %s67
    %p73 = scmp.eq.s32.totalorder %s10, 0
    %p74 = por %p72, %p73
    %p75 = scmp.ne.s32.totalorder %s64, %s67
    %p76 = scmp.eq.s32.totalorder %s15, 1
    %p77 = por %p75, %p76
    %p78 = scmp.ne.s32.totalorder %s67, %s68
    %p79 = scmp.eq.s32.totalorder %s15, 0
    %p80 = por %p78, %p79
    %p81 = scmp.ne.s32.totalorder %s67, %s68
    %p82 = scmp.eq.s32.totalorder %s16, 1
    %p83 = por %p81, %p82
    %p85 = scmp.ne.s32.totalorder %s68, %s84
    %p86 = scmp.eq.s32.totalorder %s16, 0
    %p87 = por %p85, %p86
    %s89 = sadd.s32 %s88, 1
    %p92 = scmp.eq.s32.totalorder %s10, 1
    %p93 = scmp.ne.s32.totalorder %s88, %s90
    %p94 = scmp.eq.s32.totalorder %s10, 0
    %p95 = por %p93, %p94
    %p96 = scmp.ne.s32.totalorder %s88, %s90
    %p97 = scmp.eq.s32.totalorder %s15, 1
    %p98 = por %p96, %p97
    %p99 = scmp.ne.s32.totalorder %s90, %s91
    %p100 = scmp.eq.s32.totalorder %s15, 0
    %p101 = por %p99, %p100
    %p102 = scmp.ne.s32.totalorder %s90, %s91
    %p103 = scmp.eq.s32.totalorder %s16, 1
    %p104 = por %p102, %p103
    %p106 = scmp.ne.s32.totalorder %s91, %s105
    %p107 = scmp.eq.s32.totalorder %s16, 0
    %p108 = por %p106, %p107
    %s110 = sadd.s32 %s109, 1
    %p113 = scmp.eq.s32.totalorder %s10, 1
    %p114 = scmp.ne.s32.totalorder %s109, %s111
    %p115 = scmp.eq.s32.totalorder %s10, 0
    %p116 = por %p114, %p115
    %p117 = scmp.ne.s32.totalorder %s109, %s111
    %p118 = scmp.eq.s32.totalorder %s15, 1
    %p119 = por %p117, %p118
    %p120 = scmp.ne.s32.totalorder %s111, %s112
    %p121 = scmp.eq.s32.totalorder %s15, 0
    %p122 = por %p120, %p121
    %p123 = scmp.ne.s32.totalorder %s111, %s112
    %p124 = scmp.eq.s32.totalorder %s16, 1
    %p125 = por %p123, %p124
    %p127 = scmp.ne.s32.totalorder %s112, %s126
    %p128 = scmp.eq.s32.totalorder %s16, 0
    %p129 = por %p127, %p128
    %s130 = ssub.s32 %s17, %s29
    %s131 = ssub.s32 %s18, %s25
    %s132 = sor.u32 %s130, %s131
    %p133 = scmp.eq.s32.totalorder %s132, 0
    %s135 = sadd.s32 %s134, 1
    %s136 = scalar_select %p133, %s134, %s135
    %p139 = pneg %p133
    %p140 = scmp.eq.s32.totalorder %s10, 1
    %p141 = por %p139, %p140
    %p142 = scmp.ne.s32.totalorder %s134, %s137
    %p143 = scmp.eq.s32.totalorder %s10, 0
    %p144 = por %p142, %p143
    %p145 = scmp.ne.s32.totalorder %s134, %s137
    %p146 = scmp.eq.s32.totalorder %s15, 1
    %p147 = por %p145, %p146
    %p148 = scmp.ne.s32.totalorder %s137, %s138
    %p149 = scmp.eq.s32.totalorder %s15, 0
    %p150 = por %p148, %p149
    %p151 = scmp.ne.s32.totalorder %s137, %s138
    %p152 = scmp.eq.s32.totalorder %s16, 1
    %p153 = por %p151, %p152
    %p155 = scmp.ne.s32.totalorder %s138, %s154
    %p156 = scmp.eq.s32.totalorder %s16, 0
    %p157 = por %p155, %p156
    %p158 = scmp.le.s32.totalorder 1, %s10
    %p159 = scmp.lt.s32.totalorder %s10, 3
    %p160 = pnand %p158, %p159
    %p161 = pneg %p160
    // Predicated region
    $region9: #{single_conv.1} parent=5 // pred_check
      _
    $region10: #{single_conv.1} parent=5 // pred_check_branch
      %163 = sbr.rel (%p160) target = $region12
    $region11: #{single_conv.1} parent=5 // pred_region
      %s164 = ssub.s32 %s10, 1
      // Predicated region
      $region13: #{single_conv.1} parent=11 // pred_check
        %p165 = pneg %p101
      $region14: #{single_conv.1} parent=11 // pred_check_branch
        %167 = sbr.rel (%p165) target = $region16
      $region15: #{single_conv.1} parent=11 // pred_region
        _
      $region16: #{single_conv.1} parent=11 // pred_fallthru
        _
      // Predicated region
      $region17: #{single_conv.1} parent=11 // pred_check
        %p168 = pneg %p122
      $region18: #{single_conv.1} parent=11 // pred_check_branch
        %170 = sbr.rel (%p168) target = $region20
      $region19: #{single_conv.1} parent=11 // pred_region
        _
      $region20: #{single_conv.1} parent=11 // pred_fallthru
        _
    $region12: #{single_conv.1} parent=5 // pred_fallthru
      _
    %p171 = scmp.lt.s32.totalorder %s10, 2
    // Predicated region
    $region21: #{single_conv.1} parent=5 // pred_check
      %p172 = pneg %p171
    $region22: #{single_conv.1} parent=5 // pred_check_branch
      %174 = sbr.rel (%p172) target = $region24
    $region23: #{single_conv.1} parent=5 // pred_region
      // Predicated region
      $region25: #{single_conv.1} parent=23 // pred_check
        %p175 = pneg %p44
      $region26: #{single_conv.1} parent=23 // pred_check_branch
        %177 = sbr.rel (%p175) target = $region28
      $region27: #{single_conv.1} parent=23 // pred_region
        %s178 = smul.u32 2, %s18
        %p179 = scmp.lt.s32.totalorder %s17, 1
        %s180 = scalar_select %p179, %s17, 1
        %p181 = scmp.lt.s32.totalorder %s178, 3
        %s182 = scalar_select %p181, %s178, 3
        %s183 = smul.addr %s180, 4
        %s184 = sadd.s32 %s182, %s183
        %s185 = smul.addr %s184, 4
        %s186 = scalar_lea.vmem %s0, %s185
        %s187 = smul.u32 2, %s18
      $region28: #{single_conv.1} parent=23 // pred_fallthru
        _
      // Predicated region
      $region29: #{single_conv.1} parent=23 // pred_check
        %p188 = pneg %p74
      $region30: #{single_conv.1} parent=23 // pred_check_branch
        %190 = sbr.rel (%p188) target = $region32
      $region31: #{single_conv.1} parent=23 // pred_region
        %s191 = sadd.s32 %s18, 1
        %s192 = smul.u32 2, %s191
        %p193 = scmp.lt.s32.totalorder %s17, 1
        %s194 = scalar_select %p193, %s17, 1
        %p195 = scmp.lt.s32.totalorder %s192, 3
        %s196 = scalar_select %p195, %s192, 3
        %s197 = smul.addr %s194, 4
        %s198 = sadd.s32 %s196, %s197
        %s199 = smul.addr %s198, 4
        %s200 = scalar_lea.vmem %s1, %s199
        %s201 = sadd.s32 %s18, 1
        %s202 = smul.u32 2, %s201
      $region32: #{single_conv.1} parent=23 // pred_fallthru
        _
    $region24: #{single_conv.1} parent=5 // pred_fallthru
      _
    %p203 = scmp.le.s32.totalorder 1, %s10
    %p204 = scmp.lt.s32.totalorder %s10, 3
    %p205 = pnand %p203, %p204
    %p206 = pneg %p205
    // Predicated region
    $region33: #{single_conv.1} parent=5 // pred_check
      _
    $region34: #{single_conv.1} parent=5 // pred_check_branch
      %208 = sbr.rel (%p205) target = $region36
    $region35: #{single_conv.1} parent=5 // pred_region
      %s209 = ssub.s32 %s10, 1
      %s210 = smul.u32 2, %s20
      %p211 = scmp.lt.s32.totalorder %s19, 1
      %s212 = scalar_select %p211, %s19, 1
      %p213 = scmp.lt.s32.totalorder %s210, 3
      %s214 = scalar_select %p213, %s210, 3
      %s215 = smul.addr %s212, 4
      %s216 = sadd.s32 %s214, %s215
      %s217 = smul.addr %s216, 4
      %s218 = scalar_lea.vmem %s0, %s217
      %p219 = pneg %p50
      %p220 = pneg %p47
      %s221 = sadd.s32 %s20, 1
      %s222 = smul.u32 2, %s221
      %p223 = scmp.lt.s32.totalorder %s19, 1
      %s224 = scalar_select %p223, %s19, 1
      %p225 = scmp.lt.s32.totalorder %s222, 3
      %s226 = scalar_select %p225, %s222, 3
      %s227 = smul.addr %s224, 4
      %s228 = sadd.s32 %s226, %s227
      %s229 = smul.addr %s228, 4
      %s230 = scalar_lea.vmem %s1, %s229
      %p231 = pneg %p80
      %p232 = pneg %p77
      %p233 = pneg %p101
      %p234 = pneg %p98
      %p235 = pneg %p122
      %p236 = pneg %p119
      %p237 = pneg %p150
      %p238 = pneg %p147
      %s239 = smul.u32 2, %s20
      %p240 = scmp.lt.s32.totalorder %s19, 1
      %s241 = scalar_select %p240, %s19, 1
      %p242 = scmp.lt.s32.totalorder %s239, 1
      %s243 = scalar_select %p242, %s239, 1
      %s244 = smul.addr %s241, 2
      %s245 = sadd.s32 %s243, %s244
      %s246 = smul.addr %s245, 8
      %s247 = scalar_lea.vmem %s4, %s246
      %s248 = smul.u32 2, %s20
      %p249 = scmp.lt.s32.totalorder %s19, 1
      %s250 = scalar_select %p249, %s19, 1
      %p251 = scmp.lt.s32.totalorder %s248, 3
      %s252 = scalar_select %p251, %s248, 3
      %s253 = smul.addr %s250, 4
      %s254 = sadd.s32 %s252, %s253
      %s255 = smul.addr %s254, 4
      %s256 = scalar_lea.vmem %s0, %s255
      %s257 = smul.u32 2, %s20
      %s258 = sadd.s32 %s20, 1
      %s259 = smul.u32 2, %s258
      %p260 = scmp.lt.s32.totalorder %s19, 1
      %s261 = scalar_select %p260, %s19, 1
      %p262 = scmp.lt.s32.totalorder %s259, 3
      %s263 = scalar_select %p262, %s259, 3
      %s264 = smul.addr %s261, 4
      %s265 = sadd.s32 %s263, %s264
      %s266 = smul.addr %s265, 4
      %s267 = scalar_lea.vmem %s1, %s266
      %s268 = sadd.s32 %s20, 1
      %s269 = smul.u32 2, %s268
      %s270 = smul.u32 2, %s20
      %p271 = scmp.lt.s32.totalorder %s19, 1
      %s272 = scalar_select %p271, %s19, 1
      %p273 = scmp.lt.s32.totalorder %s270, 1
      %s274 = scalar_select %p273, %s270, 1
      %s275 = smul.addr %s272, 2
      %s276 = sadd.s32 %s274, %s275
      %s277 = smul.addr %s276, 8
      %s278 = scalar_lea.vmem %s4, %s277
      %s279 = smul.u32 2, %s20
      %v281 = vld [vmem:[%s256] sm:$0xf]
      %v282 = vld [vmem:[%s256 + $0x4] sm:$0xf]
      %283 = vst [vmem:[#allocation2] sm:$0xf] %v281
      %284 = vst [vmem:[#allocation2 + $0x4] sm:$0xf] %v282
      %v285 = vld [vmem:[%s267] sm:$0x3]
      %286 = vst [vmem:[#allocation2 + $0x8] sm:$0x3] %v285
      %v287 = vld [vmem:[#allocation2] sm:$0xf]
      %v288 = vld [vmem:[#allocation2 + $0x4] sm:$0xf]
      %v289 = vld [vmem:[%s2] sm:$0xf]
      %v290 = vld [vmem:[%s2 + $0x4] sm:$0xf]
      %v291 = vld [vmem:[%s2 + $0x8] sm:$0xf]
      %v292 = vld [vmem:[%s2 + $0xc] sm:$0xf]
      %v293 = vld [vmem:[%s2 + $0x10] sm:$0xf]
      %v294 = vld [vmem:[%s2 + $0x14] sm:$0xf]
      %v295 = vld [vmem:[%s2 + $0x18] sm:$0xf]
      %v296 = vld [vmem:[%s2 + $0x1c] sm:$0xf]
      %v297 = vld [vmem:[%s2 + $0x20] sm:$0xf]
      %v298 = vld [vmem:[%s2 + $0x24] sm:$0xf]
      %v299 = vld [vmem:[%s2 + $0x28] sm:$0xf]
      %v300 = vld [vmem:[%s2 + $0x2c] sm:$0xf]
      %v301 = vld [vmem:[%s2 + $0x30] sm:$0xf]
      %v302 = vld [vmem:[%s2 + $0x34] sm:$0xf]
      %v303 = vld [vmem:[%s2 + $0x38] sm:$0xf]
      %v304 = vld [vmem:[%s2 + $0x3c] sm:$0xf]
      %v305 = vld [vmem:[#allocation2 + $0x8] sm:$0x1]
      %s306 = scalar_lea.vmem %s2, 64
      %v307 = vld [vmem:[%s306] sm:$0xf]
      %v308 = vld [vmem:[%s306 + $0x4] sm:$0xf]
      %v309 = vld [vmem:[%s306 + $0x8] sm:$0xf]
      %v310 = vld [vmem:[%s306 + $0xc] sm:$0xf]
      %v311 = vld [vmem:[%s306 + $0x10] sm:$0xf]
      %v312 = vld [vmem:[%s306 + $0x14] sm:$0xf]
      %v313 = vld [vmem:[%s306 + $0x18] sm:$0xf]
      %v314 = vld [vmem:[%s306 + $0x1c] sm:$0xf]
      %v315 = vld [vmem:[%s306 + $0x20] sm:$0xf]
      %v316 = vld [vmem:[%s306 + $0x24] sm:$0xf]
      %v317 = vld [vmem:[%s306 + $0x28] sm:$0xf]
      %v318 = vld [vmem:[%s306 + $0x2c] sm:$0xf]
      %v319 = vld [vmem:[%s306 + $0x30] sm:$0xf]
      %v320 = vld [vmem:[%s306 + $0x34] sm:$0xf]
      %v321 = vld [vmem:[%s306 + $0x38] sm:$0xf]
      %v322 = vld [vmem:[%s306 + $0x3c] sm:$0xf]
      %v326 = vunpack.c.l.b16 %v287
      %v327 = vunpack.c.l.b16 %v288
      %v328 = vunpack.c.l.b16 %v305
      %v329 = vpack.c.b16 %v327, %v326
      %v330 = vpack.c.b16 %v328, %v328
      %vm331 = vsmask.f32 7424
      %v333 = vshrl.u32 %v329, 16
      %v335 = vshll.u32 %v329, 16
      %v337 = vrot.slane %v335, 1
      %v338 = vor.u32 %v333, %v337
      %v340 = vshll.u32 %v330, 16
      %v342 = vrot.slane %v340, 1
      %v343 = vsel %vm331, %v338, %v342
      %v361 = vunpack.c.l.b16 %v307
      %v362 = vunpack.c.l.b16 %v308
      %v363 = vunpack.c.l.b16 %v309
      %v364 = vunpack.c.l.b16 %v310
      %v365 = vunpack.c.l.b16 %v311
      %v366 = vunpack.c.l.b16 %v312
      %v367 = vunpack.c.l.b16 %v313
      %v368 = vunpack.c.l.b16 %v314
      %v369 = vunpack.c.l.b16 %v315
      %v370 = vunpack.c.l.b16 %v316
      %v371 = vunpack.c.l.b16 %v317
      %v372 = vunpack.c.l.b16 %v318
      %v373 = vunpack.c.l.b16 %v319
      %v374 = vunpack.c.l.b16 %v320
      %v375 = vunpack.c.l.b16 %v321
      %v376 = vunpack.c.l.b16 %v322
      %v377 = vpack.c.b16 %v362, %v361
      %v378 = vpack.c.b16 %v364, %v363
      %v379 = vpack.c.b16 %v366, %v365
      %v380 = vpack.c.b16 %v368, %v367
      %v381 = vpack.c.b16 %v370, %v369
      %v382 = vpack.c.b16 %v372, %v371
      %v383 = vpack.c.b16 %v374, %v373
      %v384 = vpack.c.b16 %v376, %v375
      %393 = vmatprep.subr.bf16.mxu0 0
      %394 = vmatpush1.bf16.msra.mxu0 %v377
      %395 = vmatprep.subr.bf16.mxu0 0
      %396 = vmatpush1.bf16.msra.mxu0 %v378
      %397 = vmatprep.subr.bf16.mxu0 0
      %398 = vmatpush1.bf16.msra.mxu0 %v379
      %399 = vmatprep.subr.bf16.mxu0 0
      %400 = vmatpush1.bf16.msra.mxu0 %v380
      %401 = vmatprep.subr.bf16.mxu0 0
      %402 = vmatpush1.bf16.msra.mxu0 %v381
      %403 = vmatprep.subr.bf16.mxu0 0
      %404 = vmatpush1.bf16.msra.mxu0 %v382
      %405 = vmatprep.subr.bf16.mxu0 0
      %406 = vmatpush1.bf16.msra.mxu0 %v383
      %407 = vmatprep.subr.bf16.mxu0 0
      %408 = vmatpush1.bf16.msra.mxu0 %v384
      %409 = vmatprep.subr.bf16.mxu0 0
      %410 = vmatpush1.bf16.msra.mxu0 0
      %411 = vmatprep.subr.bf16.mxu0 0
      %412 = vmatpush1.bf16.msra.mxu0 0
      %413 = vmatprep.subr.bf16.mxu0 0
      %414 = vmatpush1.bf16.msra.mxu0 0
      %415 = vmatprep.subr.bf16.mxu0 0
      %416 = vmatpush1.bf16.msra.mxu0 0
      %417 = vmatprep.subr.bf16.mxu0 0
      %418 = vmatpush1.bf16.msra.mxu0 0
      %419 = vmatprep.subr.bf16.mxu0 0
      %420 = vmatpush1.bf16.msra.mxu0 0
      %421 = vmatprep.subr.bf16.mxu0 0
      %422 = vmatpush1.bf16.msra.mxu0 0
      %423 = vmatprep.subr.bf16.mxu0 0
      %424 = vmatpush1.bf16.msra.mxu0 0
      %425 = vmatprep.mubr.bf16.mxu0 0
      %426 = vmatmul.mubr.bf16.gmra.mrb[0].mxu0 %v343
      %v427 = vpop.f32.mrb[0].mxu0
      %v428 = vadd.f32 0.0, %v427
      %v429 = vpop.f32.mrb[0].mxu0
      %v430 = vpop.f32.mrb[0].mxu0
      %v431 = vadd.f32 0.0, %v430
      %v432 = vpop.f32.mrb[0].mxu0
      %433 = vdwg.mxu0
      %v451 = vunpack.c.l.b16 %v289
      %v452 = vunpack.c.l.b16 %v290
      %v453 = vunpack.c.l.b16 %v291
      %v454 = vunpack.c.l.b16 %v292
      %v455 = vunpack.c.l.b16 %v293
      %v456 = vunpack.c.l.b16 %v294
      %v457 = vunpack.c.l.b16 %v295
      %v458 = vunpack.c.l.b16 %v296
      %v459 = vunpack.c.l.b16 %v297
      %v460 = vunpack.c.l.b16 %v298
      %v461 = vunpack.c.l.b16 %v299
      %v462 = vunpack.c.l.b16 %v300
      %v463 = vunpack.c.l.b16 %v301
      %v464 = vunpack.c.l.b16 %v302
      %v465 = vunpack.c.l.b16 %v303
      %v466 = vunpack.c.l.b16 %v304
      %v467 = vpack.c.b16 %v452, %v451
      %v468 = vpack.c.b16 %v454, %v453
      %v469 = vpack.c.b16 %v456, %v455
      %v470 = vpack.c.b16 %v458, %v457
      %v471 = vpack.c.b16 %v460, %v459
      %v472 = vpack.c.b16 %v462, %v461
      %v473 = vpack.c.b16 %v464, %v463
      %v474 = vpack.c.b16 %v466, %v465
      %483 = vmatprep.subr.bf16.mxu0 0
      %484 = vmatpush1.bf16.msra.mxu0 %v467
      %485 = vmatprep.subr.bf16.mxu0 0
      %486 = vmatpush1.bf16.msra.mxu0 %v468
      %487 = vmatprep.subr.bf16.mxu0 0
      %488 = vmatpush1.bf16.msra.mxu0 %v469
      %489 = vmatprep.subr.bf16.mxu0 0
      %490 = vmatpush1.bf16.msra.mxu0 %v470
      %491 = vmatprep.subr.bf16.mxu0 0
      %492 = vmatpush1.bf16.msra.mxu0 %v471
      %493 = vmatprep.subr.bf16.mxu0 0
      %494 = vmatpush1.bf16.msra.mxu0 %v472
      %495 = vmatprep.subr.bf16.mxu0 0
      %496 = vmatpush1.bf16.msra.mxu0 %v473
      %497 = vmatprep.subr.bf16.mxu0 0
      %498 = vmatpush1.bf16.msra.mxu0 %v474
      %499 = vmatprep.subr.bf16.mxu0 0
      %500 = vmatpush1.bf16.msra.mxu0 0
      %501 = vmatprep.subr.bf16.mxu0 0
      %502 = vmatpush1.bf16.msra.mxu0 0
      %503 = vmatprep.subr.bf16.mxu0 0
      %504 = vmatpush1.bf16.msra.mxu0 0
      %505 = vmatprep.subr.bf16.mxu0 0
      %506 = vmatpush1.bf16.msra.mxu0 0
      %507 = vmatprep.subr.bf16.mxu0 0
      %508 = vmatpush1.bf16.msra.mxu0 0
      %509 = vmatprep.subr.bf16.mxu0 0
      %510 = vmatpush1.bf16.msra.mxu0 0
      %511 = vmatprep.subr.bf16.mxu0 0
      %512 = vmatpush1.bf16.msra.mxu0 0
      %513 = vmatprep.subr.bf16.mxu0 0
      %514 = vmatpush1.bf16.msra.mxu0 0
      %515 = vmatprep.mubr.bf16.mxu0 0
      %516 = vmatmul.mubr.bf16.gmra.mrb[0].mxu0 %v329
      %v517 = vpop.f32.mrb[0].mxu0
      %v518 = vadd.f32 %v428, %v517
      %v519 = vpop.f32.mrb[0].mxu0
      %v520 = vpop.f32.mrb[0].mxu0
      %v521 = vadd.f32 %v431, %v520
      %v522 = vpop.f32.mrb[0].mxu0
      %523 = vdwg.mxu0
      %v524 = vld [vmem:[#allocation2] sm:$0xe]
      %s525 = scalar_lea.vmem %s2, 128
      %v526 = vld [vmem:[%s525] sm:$0xf]
      %v527 = vld [vmem:[%s525 + $0x4] sm:$0xf]
      %v528 = vld [vmem:[%s525 + $0x8] sm:$0xf]
      %v529 = vld [vmem:[%s525 + $0xc] sm:$0xf]
      %v530 = vld [vmem:[%s525 + $0x10] sm:$0xf]
      %v531 = vld [vmem:[%s525 + $0x14] sm:$0xf]
      %v532 = vld [vmem:[%s525 + $0x18] sm:$0xf]
      %v533 = vld [vmem:[%s525 + $0x1c] sm:$0xf]
      %v534 = vld [vmem:[%s525 + $0x20] sm:$0xf]
      %v535 = vld [vmem:[%s525 + $0x24] sm:$0xf]
      %v536 = vld [vmem:[%s525 + $0x28] sm:$0xf]
      %v537 = vld [vmem:[%s525 + $0x2c] sm:$0xf]
      %v538 = vld [vmem:[%s525 + $0x30] sm:$0xf]
      %v539 = vld [vmem:[%s525 + $0x34] sm:$0xf]
      %v540 = vld [vmem:[%s525 + $0x38] sm:$0xf]
      %v541 = vld [vmem:[%s525 + $0x3c] sm:$0xf]
      %v543 = vunpack.c.l.b16 %v524
      %v544 = vpack.c.b16 %v327, %v543
      %vm545 = vcmask 1046528
      %v546 = vrot.slane %v544, 1
      %v547 = vrot.slane %v330, 1
      %v548 = vsel %vm545, %v546, %v547
      %v566 = vunpack.c.l.b16 %v526
      %v567 = vunpack.c.l.b16 %v527
      %v568 = vunpack.c.l.b16 %v528
      %v569 = vunpack.c.l.b16 %v529
      %v570 = vunpack.c.l.b16 %v530
      %v571 = vunpack.c.l.b16 %v531
      %v572 = vunpack.c.l.b16 %v532
      %v573 = vunpack.c.l.b16 %v533
      %v574 = vunpack.c.l.b16 %v534
      %v575 = vunpack.c.l.b16 %v535
      %v576 = vunpack.c.l.b16 %v536
      %v577 = vunpack.c.l.b16 %v537
      %v578 = vunpack.c.l.b16 %v538
      %v579 = vunpack.c.l.b16 %v539
      %v580 = vunpack.c.l.b16 %v540
      %v581 = vunpack.c.l.b16 %v541
      %v582 = vpack.c.b16 %v567, %v566
      %v583 = vpack.c.b16 %v569, %v568
      %v584 = vpack.c.b16 %v571, %v570
      %v585 = vpack.c.b16 %v573, %v572
      %v586 = vpack.c.b16 %v575, %v574
      %v587 = vpack.c.b16 %v577, %v576
      %v588 = vpack.c.b16 %v579, %v578
      %v589 = vpack.c.b16 %v581, %v580
      %598 = vmatprep.subr.bf16.mxu0 0
      %599 = vmatpush1.bf16.msra.mxu0 %v582
      %600 = vmatprep.subr.bf16.mxu0 0
      %601 = vmatpush1.bf16.msra.mxu0 %v583
      %602 = vmatprep.subr.bf16.mxu0 0
      %603 = vmatpush1.bf16.msra.mxu0 %v584
      %604 = vmatprep.subr.bf16.mxu0 0
      %605 = vmatpush1.bf16.msra.mxu0 %v585
      %606 = vmatprep.subr.bf16.mxu0 0
      %607 = vmatpush1.bf16.msra.mxu0 %v586
      %608 = vmatprep.subr.bf16.mxu0 0
      %609 = vmatpush1.bf16.msra.mxu0 %v587
      %610 = vmatprep.subr.bf16.mxu0 0
      %611 = vmatpush1.bf16.msra.mxu0 %v588
      %612 = vmatprep.subr.bf16.mxu0 0
      %613 = vmatpush1.bf16.msra.mxu0 %v589
      %614 = vmatprep.subr.bf16.mxu0 0
      %615 = vmatpush1.bf16.msra.mxu0 0
      %616 = vmatprep.subr.bf16.mxu0 0
      %617 = vmatpush1.bf16.msra.mxu0 0
      %618 = vmatprep.subr.bf16.mxu0 0
      %619 = vmatpush1.bf16.msra.mxu0 0
      %620 = vmatprep.subr.bf16.mxu0 0
      %621 = vmatpush1.bf16.msra.mxu0 0
      %622 = vmatprep.subr.bf16.mxu0 0
      %623 = vmatpush1.bf16.msra.mxu0 0
      %624 = vmatprep.subr.bf16.mxu0 0
      %625 = vmatpush1.bf16.msra.mxu0 0
      %626 = vmatprep.subr.bf16.mxu0 0
      %627 = vmatpush1.bf16.msra.mxu0 0
      %628 = vmatprep.subr.bf16.mxu0 0
      %629 = vmatpush1.bf16.msra.mxu0 0
      %630 = vmatprep.mubr.bf16.mxu0 0
      %631 = vmatmul.mubr.bf16.gmra.mrb[0].mxu0 %v548
      %v632 = vpop.f32.mrb[0].mxu0
      %v633 = vadd.f32 0.0, %v632
      %v634 = vpop.f32.mrb[0].mxu0
      %v635 = vpop.f32.mrb[0].mxu0
      %v636 = vadd.f32 0.0, %v635
      %v637 = vpop.f32.mrb[0].mxu0
      %638 = vdwg.mxu0
      %v639 = vadd.f32 %v518, %v633
      %v640 = vadd.f32 %v521, %v636
      %v641 = vld [vmem:[#allocation2 + $0x8] sm:$0x3]
      %s642 = scalar_lea.vmem %s2, 192
      %v643 = vld [vmem:[%s642] sm:$0xf]
      %v644 = vld [vmem:[%s642 + $0x4] sm:$0xf]
      %v645 = vld [vmem:[%s642 + $0x8] sm:$0xf]
      %v646 = vld [vmem:[%s642 + $0xc] sm:$0xf]
      %v647 = vld [vmem:[%s642 + $0x10] sm:$0xf]
      %v648 = vld [vmem:[%s642 + $0x14] sm:$0xf]
      %v649 = vld [vmem:[%s642 + $0x18] sm:$0xf]
      %v650 = vld [vmem:[%s642 + $0x1c] sm:$0xf]
      %v651 = vld [vmem:[%s642 + $0x20] sm:$0xf]
      %v652 = vld [vmem:[%s642 + $0x24] sm:$0xf]
      %v653 = vld [vmem:[%s642 + $0x28] sm:$0xf]
      %v654 = vld [vmem:[%s642 + $0x2c] sm:$0xf]
      %v655 = vld [vmem:[%s642 + $0x30] sm:$0xf]
      %v656 = vld [vmem:[%s642 + $0x34] sm:$0xf]
      %v657 = vld [vmem:[%s642 + $0x38] sm:$0xf]
      %v658 = vld [vmem:[%s642 + $0x3c] sm:$0xf]
      %v660 = vunpack.c.l.b16 %v641
      %v661 = vpack.c.b16 %v660, %v660
      %vm662 = vsmask.f32 6400
      %v664 = vshrl.u32 %v544, 16
      %v666 = vrot.slane %v664, 1
      %v667 = vshll.u32 %v544, 16
      %v669 = vrot.slane %v667, 2
      %v670 = vor.u32 %v666, %v669
      %v672 = vshrl.u32 %v661, 16
      %v674 = vrot.slane %v672, 1
      %v675 = vshll.u32 %v661, 16
      %v677 = vrot.slane %v675, 2
      %v678 = vor.u32 %v674, %v677
      %v679 = vsel %vm662, %v670, %v678
      %v697 = vunpack.c.l.b16 %v643
      %v698 = vunpack.c.l.b16 %v644
      %v699 = vunpack.c.l.b16 %v645
      %v700 = vunpack.c.l.b16 %v646
      %v701 = vunpack.c.l.b16 %v647
      %v702 = vunpack.c.l.b16 %v648
      %v703 = vunpack.c.l.b16 %v649
      %v704 = vunpack.c.l.b16 %v650
      %v705 = vunpack.c.l.b16 %v651
      %v706 = vunpack.c.l.b16 %v652
      %v707 = vunpack.c.l.b16 %v653
      %v708 = vunpack.c.l.b16 %v654
      %v709 = vunpack.c.l.b16 %v655
      %v710 = vunpack.c.l.b16 %v656
      %v711 = vunpack.c.l.b16 %v657
      %v712 = vunpack.c.l.b16 %v658
      %v713 = vpack.c.b16 %v698, %v697
      %v714 = vpack.c.b16 %v700, %v699
      %v715 = vpack.c.b16 %v702, %v701
      %v716 = vpack.c.b16 %v704, %v703
      %v717 = vpack.c.b16 %v706, %v705
      %v718 = vpack.c.b16 %v708, %v707
      %v719 = vpack.c.b16 %v710, %v709
      %v720 = vpack.c.b16 %v712, %v711
      %729 = vmatprep.subr.bf16.mxu0 0
      %730 = vmatpush1.bf16.msra.mxu0 %v713
      %731 = vmatprep.subr.bf16.mxu0 0
      %732 = vmatpush1.bf16.msra.mxu0 %v714
      %733 = vmatprep.subr.bf16.mxu0 0
      %734 = vmatpush1.bf16.msra.mxu0 %v715
      %735 = vmatprep.subr.bf16.mxu0 0
      %736 = vmatpush1.bf16.msra.mxu0 %v716
      %737 = vmatprep.subr.bf16.mxu0 0
      %738 = vmatpush1.bf16.msra.mxu0 %v717
      %739 = vmatprep.subr.bf16.mxu0 0
      %740 = vmatpush1.bf16.msra.mxu0 %v718
      %741 = vmatprep.subr.bf16.mxu0 0
      %742 = vmatpush1.bf16.msra.mxu0 %v719
      %743 = vmatprep.subr.bf16.mxu0 0
      %744 = vmatpush1.bf16.msra.mxu0 %v720
      %745 = vmatprep.subr.bf16.mxu0 0
      %746 = vmatpush1.bf16.msra.mxu0 0
      %747 = vmatprep.subr.bf16.mxu0 0
      %748 = vmatpush1.bf16.msra.mxu0 0
      %749 = vmatprep.subr.bf16.mxu0 0
      %750 = vmatpush1.bf16.msra.mxu0 0
      %751 = vmatprep.subr.bf16.mxu0 0
      %752 = vmatpush1.bf16.msra.mxu0 0
      %753 = vmatprep.subr.bf16.mxu0 0
      %754 = vmatpush1.bf16.msra.mxu0 0
      %755 = vmatprep.subr.bf16.mxu0 0
      %756 = vmatpush1.bf16.msra.mxu0 0
      %757 = vmatprep.subr.bf16.mxu0 0
      %758 = vmatpush1.bf16.msra.mxu0 0
      %759 = vmatprep.subr.bf16.mxu0 0
      %760 = vmatpush1.bf16.msra.mxu0 0
      %761 = vmatprep.mubr.bf16.mxu0 0
      %762 = vmatmul.mubr.bf16.gmra.mrb[0].mxu0 %v679
      %v763 = vpop.f32.mrb[0].mxu0
      %v764 = vadd.f32 0.0, %v763
      %v765 = vpop.f32.mrb[0].mxu0
      %v766 = vpop.f32.mrb[0].mxu0
      %v767 = vadd.f32 0.0, %v766
      %v768 = vpop.f32.mrb[0].mxu0
      %769 = vdwg.mxu0
      %v770 = vadd.f32 %v639, %v764
      %v771 = vadd.f32 %v640, %v767
      %v772 = vld [vmem:[#allocation2] sm:$0xc]
      %s773 = scalar_lea.vmem %s2, 256
      %v774 = vld [vmem:[%s773] sm:$0xf]
      %v775 = vld [vmem:[%s773 + $0x4] sm:$0xf]
      %v776 = vld [vmem:[%s773 + $0x8] sm:$0xf]
      %v777 = vld [vmem:[%s773 + $0xc] sm:$0xf]
      %v778 = vld [vmem:[%s773 + $0x10] sm:$0xf]
      %v779 = vld [vmem:[%s773 + $0x14] sm:$0xf]
      %v780 = vld [vmem:[%s773 + $0x18] sm:$0xf]
      %v781 = vld [vmem:[%s773 + $0x1c] sm:$0xf]
      %v782 = vld [vmem:[%s773 + $0x20] sm:$0xf]
      %v783 = vld [vmem:[%s773 + $0x24] sm:$0xf]
      %v784 = vld [vmem:[%s773 + $0x28] sm:$0xf]
      %v785 = vld [vmem:[%s773 + $0x2c] sm:$0xf]
      %v786 = vld [vmem:[%s773 + $0x30] sm:$0xf]
      %v787 = vld [vmem:[%s773 + $0x34] sm:$0xf]
      %v788 = vld [vmem:[%s773 + $0x38] sm:$0xf]
      %v789 = vld [vmem:[%s773 + $0x3c] sm:$0xf]
      %v791 = vunpack.c.l.b16 %v772
      %v792 = vpack.c.b16 %v327, %v791
      %vm793 = vcmask 1045504
      %v794 = vrot.slane %v792, 2
      %v795 = vrot.slane %v661, 2
      %v796 = vsel %vm793, %v794, %v795
      %v814 = vunpack.c.l.b16 %v774
      %v815 = vunpack.c.l.b16 %v775
      %v816 = vunpack.c.l.b16 %v776
      %v817 = vunpack.c.l.b16 %v777
      %v818 = vunpack.c.l.b16 %v778
      %v819 = vunpack.c.l.b16 %v779
      %v820 = vunpack.c.l.b16 %v780
      %v821 = vunpack.c.l.b16 %v781
      %v822 = vunpack.c.l.b16 %v782
      %v823 = vunpack.c.l.b16 %v783
      %v824 = vunpack.c.l.b16 %v784
      %v825 = vunpack.c.l.b16 %v785
      %v826 = vunpack.c.l.b16 %v786
      %v827 = vunpack.c.l.b16 %v787
      %v828 = vunpack.c.l.b16 %v788
      %v829 = vunpack.c.l.b16 %v789
      %v830 = vpack.c.b16 %v815, %v814
      %v831 = vpack.c.b16 %v817, %v816
      %v832 = vpack.c.b16 %v819, %v818
      %v833 = vpack.c.b16 %v821, %v820
      %v834 = vpack.c.b16 %v823, %v822
      %v835 = vpack.c.b16 %v825, %v824
      %v836 = vpack.c.b16 %v827, %v826
      %v837 = vpack.c.b16 %v829, %v828
      %846 = vmatprep.subr.bf16.mxu0 0
      %847 = vmatpush1.bf16.msra.mxu0 %v830
      %848 = vmatprep.subr.bf16.mxu0 0
      %849 = vmatpush1.bf16.msra.mxu0 %v831
      %850 = vmatprep.subr.bf16.mxu0 0
      %851 = vmatpush1.bf16.msra.mxu0 %v832
      %852 = vmatprep.subr.bf16.mxu0 0
      %853 = vmatpush1.bf16.msra.mxu0 %v833
      %854 = vmatprep.subr.bf16.mxu0 0
      %855 = vmatpush1.bf16.msra.mxu0 %v834
      %856 = vmatprep.subr.bf16.mxu0 0
      %857 = vmatpush1.bf16.msra.mxu0 %v835
      %858 = vmatprep.subr.bf16.mxu0 0
      %859 = vmatpush1.bf16.msra.mxu0 %v836
      %860 = vmatprep.subr.bf16.mxu0 0
      %861 = vmatpush1.bf16.msra.mxu0 %v837
      %862 = vmatprep.subr.bf16.mxu0 0
      %863 = vmatpush1.bf16.msra.mxu0 0
      %864 = vmatprep.subr.bf16.mxu0 0
      %865 = vmatpush1.bf16.msra.mxu0 0
      %866 = vmatprep.subr.bf16.mxu0 0
      %867 = vmatpush1.bf16.msra.mxu0 0
      %868 = vmatprep.subr.bf16.mxu0 0
      %869 = vmatpush1.bf16.msra.mxu0 0
      %870 = vmatprep.subr.bf16.mxu0 0
      %871 = vmatpush1.bf16.msra.mxu0 0
      %872 = vmatprep.subr.bf16.mxu0 0
      %873 = vmatpush1.bf16.msra.mxu0 0
      %874 = vmatprep.subr.bf16.mxu0 0
      %875 = vmatpush1.bf16.msra.mxu0 0
      %876 = vmatprep.subr.bf16.mxu0 0
      %877 = vmatpush1.bf16.msra.mxu0 0
      %878 = vmatprep.mubr.bf16.mxu0 0
      %879 = vmatmul.mubr.bf16.gmra.mrb[0].mxu0 %v796
      %v880 = vpop.f32.mrb[0].mxu0
      %v881 = vadd.f32 0.0, %v880
      %v882 = vpop.f32.mrb[0].mxu0
      %v883 = vpop.f32.mrb[0].mxu0
      %v884 = vadd.f32 0.0, %v883
      %v885 = vpop.f32.mrb[0].mxu0
      %886 = vdwg.mxu0
      %v887 = vadd.f32 %v770, %v881
      %v888 = vadd.f32 %v771, %v884
      %v889 = vld [vmem:[%s3] sm:$0x1]
      %v891 = vlaneseq
      %v892 = vshrl.u32 %v891, 7
      %v893 = vsub.s32 0, %v892
      %v894 = vrot.slane %v889, %v893
      %v896 = vadd.f32 %v887, %v894
      %v897 = vadd.f32 %v888, %v894
      %v898 = vmax.f32 %v896, 0.0
      %v899 = vmax.f32 %v897, 0.0
      %900 = vst [vmem:[%s278] sm:$0xff] %v898
      %901 = vst [vmem:[%s278 + $0x8] sm:$0xff] %v899
      %s902 = smul.u32 2, %s20
      %p903 = scmp.lt.s32.totalorder %s19, 1
      %s904 = scalar_select %p903, %s19, 1
      %p905 = scmp.lt.s32.totalorder %s902, 1
      %s906 = scalar_select %p905, %s902, 1
      %s907 = smul.addr %s904, 2
      %s908 = sadd.s32 %s906, %s907
      %s909 = smul.addr %s908, 8
      %s910 = scalar_lea.vmem %s4, %s909
      // Predicated region
      $region37: #{single_conv.1} parent=35 // pred_check
        %p911 = pneg %p147
      $region38: #{single_conv.1} parent=35 // pred_check_branch
        %913 = sbr.rel (%p911) target = $region40
      $region39: #{single_conv.1} parent=35 // pred_region
        %s914 = smul.u32 2, %s20
      $region40: #{single_conv.1} parent=35 // pred_fallthru
        _
    $region36: #{single_conv.1} parent=5 // pred_fallthru
      _
    %p915 = scmp.le.s32.totalorder 2, %s10
    // Predicated region
    $region41: #{single_conv.1} parent=5 // pred_check
      %p916 = pneg %p915
    $region42: #{single_conv.1} parent=5 // pred_check_branch
      %918 = sbr.rel (%p916) target = $region44
    $region43: #{single_conv.1} parent=5 // pred_region
      %s919 = ssub.s32 %s10, 2
      // Predicated region
      $region45: #{single_conv.1} parent=43 // pred_check
        %p920 = pneg %p153
      $region46: #{single_conv.1} parent=43 // pred_check_branch
        %922 = sbr.rel (%p920) target = $region48
      $region47: #{single_conv.1} parent=43 // pred_region
        %s923 = smul.u32 2, %s22
        %p924 = scmp.lt.s32.totalorder %s21, 1
        %s925 = scalar_select %p924, %s21, 1
        %p926 = scmp.lt.s32.totalorder %s923, 1
        %s927 = scalar_select %p926, %s923, 1
        %s928 = smul.addr %s925, 2
        %s929 = sadd.s32 %s927, %s928
        %s930 = smul.addr %s929, 8
        %s931 = scalar_lea.vmem %s4, %s930
      $region48: #{single_conv.1} parent=43 // pred_fallthru
        _
    $region44: #{single_conv.1} parent=5 // pred_fallthru
      _
  $region6: #{single_conv.1} parent=0 // loop_footer
    %s14 = sadd.s32 1, %s10
  $region7: #{single_conv.1} parent=0 // loop_footer_branch
    %9 = sbr.rel target = $region3
  $region8: #{single_conv.1} parent=0 // loop_exit
    _

</llo_original>
